<compile_context>
chip_gen: v6e
topology: v6e:2x2x1
jax: 0.10.0
libtpu: 0.0.40
codegen_flags: <defaults>
</compile_context>

<pallas_src>
import jax
import jax.numpy as jnp
from jax.experimental import pallas as pl
from jax.experimental.pallas import tpu as pltpu

_LANE = 1024                    # lane-dense last dim (multiple of 128)
_TARGET_TILE_BYTES = 8 << 20    # ~8 MiB per tile; in+out double-buffered = 32 MiB
_VMEM_LIMIT_BYTES = 48 << 20    # < 64 MiB physical on v7x, ample headroom on v5e/v6e


def _biased_elu_kernel(x_ref, o_ref):
    # ELU(x) + 1 == where(x > 0, x + 1, exp(x))
    x = x_ref[...].astype(jnp.float32)
    o_ref[...] = jnp.where(x > 0, x + 1.0, jnp.exp(x)).astype(o_ref.dtype)


def _sublane_multiple(dtype) -> int:
    # Packed-sublane granularity: 8 for 32-bit, 16 for 16-bit, 32 for 8-bit.
    itemsize = jnp.dtype(dtype).itemsize
    return max(8, 32 // itemsize)


def biased_elu(x: jax.Array) -> jax.Array:
    """ELU(x) + 1, computed in a Pallas TPU kernel (any input shape)."""
    orig_shape = x.shape
    orig_dtype = x.dtype
    n = x.size
    itemsize = jnp.dtype(orig_dtype).itemsize

    if n == 0:
        return x

    # --- flatten to a lane-dense 2D slab --------------------------------
    flat = x.reshape(-1)
    pad = (-n) % _LANE
    if pad:
        # Rare ragged-tail case only: pad so the last dim is exactly _LANE.
        # Zero-padding is safe (exp(0)=1, sliced off below).
        flat = jnp.pad(flat, (0, pad))
    rows = (n + pad) // _LANE
    x2 = flat.reshape(rows, _LANE)

    # --- dtype-aware tile size: keep ~constant bytes per tile ------------
    sub = _sublane_multiple(orig_dtype)
    block_rows = _TARGET_TILE_BYTES // (_LANE * itemsize)
    block_rows = max(sub, (block_rows // sub) * sub)
    if rows <= block_rows:
        block_rows = rows                  # single block == full array
    grid = (pl.cdiv(rows, block_rows),)    # partial last block masked by Pallas

    out2 = pl.pallas_call(
        _biased_elu_kernel,
        out_shape=jax.ShapeDtypeStruct((rows, _LANE), orig_dtype),
        grid=grid,
        in_specs=[pl.BlockSpec((block_rows, _LANE), lambda i: (i, 0))],
        out_specs=pl.BlockSpec((block_rows, _LANE), lambda i: (i, 0)),
        compiler_params=pltpu.CompilerParams(
            dimension_semantics=("parallel",),
            vmem_limit_bytes=_VMEM_LIMIT_BYTES,
        ),
        cost_estimate=pl.CostEstimate(
            flops=2 * n, transcendentals=n, bytes_accessed=2 * n * itemsize),
    )(x2)

    if pad:
        return out2.reshape(-1)[:n].reshape(orig_shape)
    return out2.reshape(orig_shape)


def biased_elu_ref(x: jax.Array) -> jax.Array:
    """Pure-JAX reference (matches torch.nn.ELU()(x) + 1)."""
    return jax.nn.elu(x) + 1.0


if __name__ == "__main__":
    key = jax.random.PRNGKey(0)
    # Small NCHW input consistent with the module's elementwise forward.
    x = jax.random.normal(key, (2, 4, 16, 16), dtype=jnp.float32)

    out = biased_elu(x)
    jax.block_until_ready(out)

    ref = biased_elu_ref(x)
    assert out.shape == x.shape and out.dtype == x.dtype
    assert jnp.allclose(out, ref, atol=1e-6, rtol=1e-6)

    # Multi-tile path with a partial last block (size divisible by 1024,
    # rows not divisible by block_rows) -> no pad, no slice.
    x_big = jax.random.normal(jax.random.PRNGKey(1), (8, 16, 128, 130),
                              dtype=jnp.float32)
    out_big = biased_elu(x_big)
    jax.block_until_ready(out_big)
    assert jnp.allclose(out_big, biased_elu_ref(x_big), atol=1e-6, rtol=1e-6)

    # Ragged-tail fallback path (size NOT divisible by 1024).
    x_odd = jax.random.normal(jax.random.PRNGKey(2), (3, 5, 7, 11),
                              dtype=jnp.float32)
    out_odd = biased_elu(x_odd)
    jax.block_until_ready(out_odd)
    assert jnp.allclose(out_odd, biased_elu_ref(x_odd), atol=1e-6, rtol=1e-6)

    # bf16 path (larger rows-per-tile to keep ~8 MiB tiles).
    x_bf16 = jax.random.normal(jax.random.PRNGKey(3), (4, 8, 64, 128),
                               dtype=jnp.bfloat16)
    out_bf16 = biased_elu(x_bf16)
    jax.block_until_ready(out_bf16)
    assert jnp.allclose(out_bf16, biased_elu_ref(x_bf16), atol=1e-2, rtol=1e-2)

    print("KERNEL_OK")
</pallas_src>

<mosaic_0001>
module attributes {stable_mosaic.version = 11 : i64} {
  func.func @_biased_elu_kernel(%arg0: i32, %arg1: memref<2x1024xf32, #tpu.memory_space<vmem>>, %arg2: memref<2x1024xf32, #tpu.memory_space<vmem>>) attributes {dimension_semantics = [#tpu.dimension_semantics<parallel>], iteration_bounds = array<i64: 1>, scalar_prefetch = 0 : i64, scratch_operands = 0 : i64, tpu.core_type = #tpu.core_type<tc>, window_params = [{transform_indices = @transform_0, window_bounds = array<i64: 2, 1024>}, {transform_indices = @transform_1, window_bounds = array<i64: 2, 1024>}]} {
    %c0 = arith.constant 0 : index
    %c0_0 = arith.constant 0 : index
    %0 = vector.load %arg1[%c0, %c0_0] : memref<2x1024xf32, #tpu.memory_space<vmem>>, vector<2x1024xf32>
    %cst = arith.constant 0.000000e+00 : f32
    %1 = vector.broadcast %cst : f32 to vector<2x1024xf32>
    %2 = arith.cmpf ogt, %0, %1 : vector<2x1024xf32>
    %cst_1 = arith.constant 1.000000e+00 : f32
    %3 = vector.broadcast %cst_1 : f32 to vector<2x1024xf32>
    %4 = arith.addf %0, %3 : vector<2x1024xf32>
    %5 = math.exp %0 : vector<2x1024xf32>
    %6 = arith.select %2, %4, %5 : vector<2x1024xi1>, vector<2x1024xf32>
    %c0_2 = arith.constant 0 : index
    %c0_3 = arith.constant 0 : index
    %7 = vector.load %arg2[%c0_2, %c0_3] : memref<2x1024xf32, #tpu.memory_space<vmem>>, vector<2x1024xf32>
    tpu.vector_store %arg2[%c0_2, %c0_3], %6 {strides = array<i32>} : memref<2x1024xf32, #tpu.memory_space<vmem>>, vector<2x1024xf32>,
    return
  }
  func.func @transform_0(%arg0: i32) -> (i32, i32) {
    %c0_i32 = arith.constant 0 : i32
    %c0_i32_0 = arith.constant 0 : i32
    return %arg0, %c0_i32 : i32, i32
  }
  func.func @transform_1(%arg0: i32) -> (i32, i32) {
    %c0_i32 = arith.constant 0 : i32
    %c0_i32_0 = arith.constant 0 : i32
    return %arg0, %c0_i32 : i32, i32
  }
}

</mosaic_0001>

<llo_original>
// kernel: tpu_custom_call.1
$region0: #{tpu_custom_call.1}
  #allocation0 [shape = 'u32[]', space=smem, size = 0x4, offset = 0x4, fixed_abs, tag = 'smem constant byte address 0x4 - core index']
  #allocation1 [shape = 'u32[144,128]{1,0:T(1,128)}', space=vmem, size = 0x12000, scoped, tag = 'internal scratch']
  %s0 = inlined_call_operand.hbm [shape: f32[2,1024], index: 0, kind: input, shape index: {}]
  %s1 = inlined_call_operand.hbm [shape: f32[2,1024], index: 1, kind: output, shape index: {}]
  %s2 = sld [smem:[#allocation0]]
  $region18: #{tpu_custom_call.1} parent=0
    _
  %s4 = ssub.s32 1, %s2
  %s5 = scalar_select 0, %s4, %s2
  $region1: #{tpu_custom_call.1} parent=0
    #allocation2 [shape = 'u8[8192]{0}', space=vmem, size = 0x2000, scoped, tag = 'input window, operand 0, single buffered']
    #allocation3 [shape = 's32[1]{0}', space=sflag, size = 0x4, scoped, tag = 'scoped memory for tpu_custom_call.1']
    #allocation4 [shape = 's32[1]{0}', space=sflag, size = 0x4, scoped, tag = 'scoped memory for tpu_custom_call.1']
    #allocation5 [shape = 'u8[8192]{0}', space=vmem, size = 0x2000, scoped, tag = 'output window, operand 0, single buffered']
    %6 = vsyncpa [#allocation3], 0
    %7 = vsyncpa [#allocation4], 0
    // Predicated region
    $region2: #{tpu_custom_call.1} parent=1 // pred_check
      _
    $region3: #{tpu_custom_call.1} parent=1 // pred_check_branch
      %9 = sbr.rel (0) target = $region5
    $region4: #{tpu_custom_call.1} parent=1 // pred_region
      %s11 = ssub.s32 256, 256
      %12 = vsyncadd [#allocation3], %s11
      %s14 = sshll.u32 [#allocation2], 4
      %s15 = int_to_ptr.vmem [resolvable:$true] %s14
      %17 = dma.hbm_to_vmem [thread:$0]  %s0, 256, %s15, [#allocation3]
    $region5: #{tpu_custom_call.1} parent=1 // pred_fallthru
      _
    // Predicated region
    $region6: #{tpu_custom_call.1} parent=1 // pred_check
      _
    $region7: #{tpu_custom_call.1} parent=1 // pred_check_branch
      %19 = sbr.rel (0) target = $region9
    $region8: #{tpu_custom_call.1} parent=1 // pred_region
      %20 = dma.done [#allocation3], 256
    $region9: #{tpu_custom_call.1} parent=1 // pred_fallthru
      _
    %v21 = vld [vmem:[#allocation2] sm:$0xff]
    %v22 = vld [vmem:[#allocation2 + $0x8] sm:$0xff]
    %vm23 = vcmp.gt.f32.partialorder %v21, 0.0
    %vm24 = vcmp.gt.f32.partialorder %v22, 0.0
    %v25 = vadd.f32 %v21, 1.0
    %v26 = vadd.f32 %v22, 1.0
    %v27 = vmul.f32 %v21, 1.442695
    %v28 = vpow.pop %v27
    %v29 = vmul.f32 %v22, 1.442695
    %v30 = vpow.pop %v29
    %v31 = vsel %vm23, %v25, %v28
    %v32 = vsel %vm24, %v26, %v30
    %33 = vst [vmem:[#allocation5] sm:$0xff] %v31
    %34 = vst [vmem:[#allocation5 + $0x8] sm:$0xff] %v32
    // Predicated region
    $region10: #{tpu_custom_call.1} parent=1 // pred_check
      _
    $region11: #{tpu_custom_call.1} parent=1 // pred_check_branch
      %36 = sbr.rel (0) target = $region13
    $region12: #{tpu_custom_call.1} parent=1 // pred_region
      %s38 = ssub.s32 256, 256
      %39 = vsyncadd [#allocation4], %s38
      %s41 = sshll.u32 [#allocation5], 4
      %s42 = int_to_ptr.vmem [resolvable:$true] %s41
      %44 = dma.vmem_to_hbm [thread:$0]  %s42, 256, %s1, [#allocation4]
    $region13: #{tpu_custom_call.1} parent=1 // pred_fallthru
      _
    // Predicated region
    $region14: #{tpu_custom_call.1} parent=1 // pred_check
      _
    $region15: #{tpu_custom_call.1} parent=1 // pred_check_branch
      %46 = sbr.rel (0) target = $region17
    $region16: #{tpu_custom_call.1} parent=1 // pred_region
      %47 = dma.done [#allocation4], 256
    $region17: #{tpu_custom_call.1} parent=1 // pred_fallthru
      _
    %48 = vsyncpa [#allocation3], 1
    %49 = vsyncpa [#allocation4], 1

</llo_original>
